<compile_context>
chip_gen: v7x
topology: tpu7x:2x2x1
jax: 0.10.0
libtpu: 0.0.40
codegen_flags: <defaults>
</compile_context>

<pallas_src>
import functools

import numpy as np
import jax
import jax.numpy as jnp
from jax.experimental import pallas as pl
from jax.experimental.pallas import tpu as pltpu


# ----------------------------- tiny grid stand-in -----------------------------
class LatLonGrid:
    def __init__(self, lat, lon):
        self.lat = np.asarray(lat, dtype=np.float64)
        self.lon = np.asarray(lon, dtype=np.float64)

    @property
    def shape(self):
        return (len(self.lat), len(self.lon))


def _get_indexer(src_vals, dest_vals):
    """Replicates pandas.Index(src).get_indexer(dest) for exact matches."""
    lookup = {float(v): i for i, v in enumerate(src_vals)}
    return np.array([lookup.get(float(v), -1) for v in dest_vals], dtype=np.int32)


# ------------------------------- Pallas kernel --------------------------------
def _make_regrid_kernel(tb: int, lat_first: bool):
    """Kernel over a (TB, H_src, W_src) block; statically unrolled over TB."""

    def kernel(plat_ref, plon_ref, x_ref, o_ref):
        # plat_ref: (H_dst, H_src) one-hot lat gather matrix (x dtype)
        # plon_ref: (W_src, W_dst) one-hot lon gather matrix (x dtype)
        # x_ref:    (TB, H_src, W_src) batch of input slices (native dtype)
        # o_ref:    (TB, H_dst, W_dst)
        plat = plat_ref[...]
        plon = plon_ref[...]
        for i in range(tb):  # static unroll (TB is small, capped at _MAX_UNROLL)
            xi = x_ref[i]
            if lat_first:
                yi = jnp.dot(plat, xi, preferred_element_type=jnp.float32)
                yi = yi.astype(xi.dtype)  # exact: one-hot selection
                zi = jnp.dot(yi, plon, preferred_element_type=jnp.float32)
            else:
                yi = jnp.dot(xi, plon, preferred_element_type=jnp.float32)
                yi = yi.astype(xi.dtype)  # exact: one-hot selection
                zi = jnp.dot(plat, yi, preferred_element_type=jnp.float32)
            o_ref[i] = zi.astype(o_ref.dtype)

    return kernel


_MAX_UNROLL = 8                      # cap on slices per grid step (compile size)
_VMEM_LIMIT_BYTES = 48 * 1024 * 1024  # explicit scoped-VMEM limit (safe on v5e/v6e/v7x)
_VMEM_TB_BUDGET = 32 * 1024 * 1024    # block-sizing budget (headroom under the limit)


def _pick_block_batch(bc, h_src, w_src, h_dst, w_dst, itemsize):
    """Choose TB (slices per grid step) from a VMEM budget.

    Prefers an exact divisor of bc (no partial blocks) and, when possible,
    keeps >= 2 grid steps so a 2-TensorCore chip (v7x) gets balanced work.
    """
    # Constant P matrices (double-buffered by default) ...
    fixed = 2 * (h_dst * h_src + w_src * w_dst) * itemsize
    # ... plus per-slice: double-buffered input + output blocks + f32 temps.
    per_slice = (2 * h_src * w_src * itemsize
                 + 2 * h_dst * w_dst * itemsize
                 + (h_dst * w_src + h_dst * w_dst) * 4)
    budget = max(_VMEM_TB_BUDGET - fixed, per_slice)
    tb_cap = int(max(1, min(budget // per_slice, _MAX_UNROLL)))

    tb = 1
    for cand in range(1, bc + 1):
        if bc % cand == 0 and cand <= tb_cap:
            tb = cand
    if bc // tb < 2:  # try to keep at least 2 (even) grid steps for megacore
        for cand in range(tb - 1, 0, -1):
            if bc % cand == 0 and bc // cand >= 2:
                tb = cand
                break
    return tb


# --------------------------------- module -------------------------------------
class RegridLatLon:
    def __init__(self, src_grid: LatLonGrid, dest_grid: LatLonGrid):
        self._src_grid = src_grid
        self._dest_grid = dest_grid
        self._lat_index = _get_indexer(src_grid.lat, dest_grid.lat)
        assert not np.any(self._lat_index == -1)
        self._lon_index = _get_indexer(src_grid.lon, dest_grid.lon)
        assert not np.any(self._lon_index == -1)

        h_src, w_src = src_grid.shape
        h_dst, w_dst = dest_grid.shape

        # One-hot gather matrices (deterministic "parameters" of this module).
        p_lat = np.zeros((h_dst, h_src), dtype=np.float32)
        p_lat[np.arange(h_dst), self._lat_index] = 1.0
        p_lon = np.zeros((w_src, w_dst), dtype=np.float32)
        p_lon[self._lon_index, np.arange(w_dst)] = 1.0
        self._p_lat_np = p_lat
        self._p_lon_np = p_lon

        # Pick the matmul order that minimizes MXU work (apply the gather that
        # shrinks the larger extent first).
        cost_lat_first = h_dst * h_src * w_src + h_dst * w_src * w_dst
        cost_lon_first = h_src * w_src * w_dst + h_dst * h_src * w_dst
        self._lat_first = cost_lat_first <= cost_lon_first

    @functools.partial(jax.jit, static_argnums=0)
    def __call__(self, x):
        if x.shape[-2:] != self._src_grid.shape:
            raise ValueError(
                f"Input shape {x.shape} does not match grid shape "
                f"{self._src_grid.shape}"
            )
        h_src, w_src = self._src_grid.shape
        h_dst, w_dst = self._dest_grid.shape

        lead = x.shape[:-2]
        bc = int(np.prod(lead)) if lead else 1

        # Keep x in its native dtype (no full-array f32 copy in HBM).  0/1 is
        # exact in bf16/f16, so the P matrices are cast to x's dtype instead.
        if x.dtype in (jnp.float32, jnp.bfloat16, jnp.float16):
            compute_dtype = x.dtype
        else:
            # TODO(synk): f32 compute is inexact for integer |values| > 2^24
            # and for float64 inputs; a pure-gather (DMA-time) path would be
            # needed for bit-exactness on those dtypes.
            compute_dtype = jnp.float32

        x_flat = x.reshape(bc, h_src, w_src).astype(compute_dtype)
        p_lat = jnp.asarray(self._p_lat_np, dtype=compute_dtype)
        p_lon = jnp.asarray(self._p_lon_np, dtype=compute_dtype)

        itemsize = jnp.dtype(compute_dtype).itemsize
        tb = _pick_block_batch(bc, h_src, w_src, h_dst, w_dst, itemsize)
        grid = (bc // tb,)

        kernel = _make_regrid_kernel(tb, self._lat_first)

        # NOTE: the P matrices have a constant index_map, so Pallas does not
        # re-fetch them per step (single-buffering them via pl.Buffered(1)
        # would additionally halve their VMEM footprint for large grids).
        out_flat = pl.pallas_call(
            kernel,
            out_shape=jax.ShapeDtypeStruct((bc, h_dst, w_dst), compute_dtype),
            grid_spec=pltpu.PrefetchScalarGridSpec(
                num_scalar_prefetch=0,
                grid=grid,
                in_specs=[
                    pl.BlockSpec((h_dst, h_src), lambda i: (0, 0)),
                    pl.BlockSpec((w_src, w_dst), lambda i: (0, 0)),
                    pl.BlockSpec((tb, h_src, w_src), lambda i: (i, 0, 0)),
                ],
                out_specs=pl.BlockSpec((tb, h_dst, w_dst), lambda i: (i, 0, 0)),
            ),
            compiler_params=pltpu.CompilerParams(
                dimension_semantics=("parallel",),
                vmem_limit_bytes=_VMEM_LIMIT_BYTES,
            ),
        )(p_lat, p_lon, x_flat)

        out = out_flat.reshape(*lead, h_dst, w_dst)
        if out.dtype != x.dtype:
            out = out.astype(x.dtype)
        return out


# ---------------------------------- main ---------------------------------------
if __name__ == "__main__":
    # Source grid: 16 x 16; destination grid: subset (8 lats, 12 lons).
    src_lat = np.linspace(90.0, -90.0, 16)
    src_lon = np.linspace(0.0, 360.0, 16, endpoint=False)
    dest_lat = src_lat[::2]                                            # 8 lats
    dest_lon = src_lon[[0, 2, 3, 5, 6, 8, 9, 10, 11, 13, 14, 15]]      # 12 lons

    src_grid = LatLonGrid(src_lat, src_lon)
    dest_grid = LatLonGrid(dest_lat, dest_lon)

    regrid = RegridLatLon(src_grid, dest_grid)

    B, C = 2, 4
    key = jax.random.PRNGKey(0)
    x = jax.random.normal(key, (B, C, 16, 16), dtype=jnp.float32)

    out = regrid(x)
    out = jax.block_until_ready(out)

    # Reference (pure-JAX gather, mirrors the PyTorch advanced indexing).
    ref = x[..., regrid._lat_index, :][..., regrid._lon_index]
    assert out.shape == (B, C, 8, 12), out.shape
    np.testing.assert_allclose(np.asarray(out), np.asarray(ref), rtol=0, atol=0)

    print("KERNEL_OK")
</pallas_src>

<mosaic_0001>
module attributes {stable_mosaic.version = 11 : i64} {
  func.func @kernel(%arg0: i32, %arg1: memref<8x16xf32, #tpu.memory_space<vmem>>, %arg2: memref<16x12xf32, #tpu.memory_space<vmem>>, %arg3: memref<4x16x16xf32, #tpu.memory_space<vmem>>, %arg4: memref<4x8x12xf32, #tpu.memory_space<vmem>>) attributes {dimension_semantics = [#tpu.dimension_semantics<parallel>], iteration_bounds = array<i64: 2>, scalar_prefetch = 0 : i64, scratch_operands = 0 : i64, tpu.core_type = #tpu.core_type<tc>, window_params = [{pipeline_mode = #tpu.pipeline_mode<synchronous>, transform_indices = @transform_0, window_bounds = array<i64: 8, 16>}, {pipeline_mode = #tpu.pipeline_mode<synchronous>, transform_indices = @transform_1, window_bounds = array<i64: 16, 12>}, {transform_indices = @transform_2, window_bounds = array<i64: 4, 16, 16>}, {transform_indices = @transform_3, window_bounds = array<i64: 4, 8, 12>}]} {
    %c0 = arith.constant 0 : index
    %c0_0 = arith.constant 0 : index
    %0 = vector.load %arg1[%c0, %c0_0] : memref<8x16xf32, #tpu.memory_space<vmem>>, vector<8x16xf32>
    %c0_1 = arith.constant 0 : index
    %c0_2 = arith.constant 0 : index
    %1 = vector.load %arg2[%c0_1, %c0_2] : memref<16x12xf32, #tpu.memory_space<vmem>>, vector<16x12xf32>
    %c0_3 = arith.constant 0 : index
    %c0_4 = arith.constant 0 : index
    %c0_5 = arith.constant 0 : index
    %2 = vector.load %arg3[%c0_3, %c0_4, %c0_5] : memref<4x16x16xf32, #tpu.memory_space<vmem>>, vector<1x16x16xf32>
    %3 = vector.shape_cast %2 : vector<1x16x16xf32> to vector<16x16xf32>
    %cst = arith.constant dense<0.000000e+00> : vector<8x16xf32>
    %4 = tpu.matmul %0, %3, %cst {dimension_numbers = #tpu.dot_dimension_numbers<[1], [0], [0], [1], [0, 0, 1, 1], [], []>} : vector<8x16xf32>, vector<16x16xf32>, vector<8x16xf32> -> vector<8x16xf32>
    %cst_6 = arith.constant dense<0.000000e+00> : vector<8x12xf32>
    %5 = tpu.matmul %4, %1, %cst_6 {dimension_numbers = #tpu.dot_dimension_numbers<[1], [0], [0], [1], [0, 0, 1, 1], [], []>} : vector<8x16xf32>, vector<16x12xf32>, vector<8x12xf32> -> vector<8x12xf32>
    %c0_7 = arith.constant 0 : index
    %c0_8 = arith.constant 0 : index
    %c0_9 = arith.constant 0 : index
    %6 = vector.load %arg4[%c0_7, %c0_8, %c0_9] : memref<4x8x12xf32, #tpu.memory_space<vmem>>, vector<1x8x12xf32>
    %7 = vector.shape_cast %6 : vector<1x8x12xf32> to vector<8x12xf32>
    %8 = vector.shape_cast %5 : vector<8x12xf32> to vector<1x8x12xf32>
    tpu.vector_store %arg4[%c0_7, %c0_8, %c0_9], %8 {strides = array<i32>} : memref<4x8x12xf32, #tpu.memory_space<vmem>>, vector<1x8x12xf32>,
    %c1 = arith.constant 1 : index
    %c0_10 = arith.constant 0 : index
    %c0_11 = arith.constant 0 : index
    %9 = vector.load %arg3[%c1, %c0_10, %c0_11] : memref<4x16x16xf32, #tpu.memory_space<vmem>>, vector<1x16x16xf32>
    %10 = vector.shape_cast %9 : vector<1x16x16xf32> to vector<16x16xf32>
    %cst_12 = arith.constant dense<0.000000e+00> : vector<8x16xf32>
    %11 = tpu.matmul %0, %10, %cst_12 {dimension_numbers = #tpu.dot_dimension_numbers<[1], [0], [0], [1], [0, 0, 1, 1], [], []>} : vector<8x16xf32>, vector<16x16xf32>, vector<8x16xf32> -> vector<8x16xf32>
    %cst_13 = arith.constant dense<0.000000e+00> : vector<8x12xf32>
    %12 = tpu.matmul %11, %1, %cst_13 {dimension_numbers = #tpu.dot_dimension_numbers<[1], [0], [0], [1], [0, 0, 1, 1], [], []>} : vector<8x16xf32>, vector<16x12xf32>, vector<8x12xf32> -> vector<8x12xf32>
    %c1_14 = arith.constant 1 : index
    %c0_15 = arith.constant 0 : index
    %c0_16 = arith.constant 0 : index
    %13 = vector.load %arg4[%c1_14, %c0_15, %c0_16] : memref<4x8x12xf32, #tpu.memory_space<vmem>>, vector<1x8x12xf32>
    %14 = vector.shape_cast %13 : vector<1x8x12xf32> to vector<8x12xf32>
    %15 = vector.shape_cast %12 : vector<8x12xf32> to vector<1x8x12xf32>
    tpu.vector_store %arg4[%c1_14, %c0_15, %c0_16], %15 {strides = array<i32>} : memref<4x8x12xf32, #tpu.memory_space<vmem>>, vector<1x8x12xf32>,
    %c2 = arith.constant 2 : index
    %c0_17 = arith.constant 0 : index
    %c0_18 = arith.constant 0 : index
    %16 = vector.load %arg3[%c2, %c0_17, %c0_18] : memref<4x16x16xf32, #tpu.memory_space<vmem>>, vector<1x16x16xf32>
    %17 = vector.shape_cast %16 : vector<1x16x16xf32> to vector<16x16xf32>
    %cst_19 = arith.constant dense<0.000000e+00> : vector<8x16xf32>
    %18 = tpu.matmul %0, %17, %cst_19 {dimension_numbers = #tpu.dot_dimension_numbers<[1], [0], [0], [1], [0, 0, 1, 1], [], []>} : vector<8x16xf32>, vector<16x16xf32>, vector<8x16xf32> -> vector<8x16xf32>
    %cst_20 = arith.constant dense<0.000000e+00> : vector<8x12xf32>
    %19 = tpu.matmul %18, %1, %cst_20 {dimension_numbers = #tpu.dot_dimension_numbers<[1], [0], [0], [1], [0, 0, 1, 1], [], []>} : vector<8x16xf32>, vector<16x12xf32>, vector<8x12xf32> -> vector<8x12xf32>
    %c2_21 = arith.constant 2 : index
    %c0_22 = arith.constant 0 : index
    %c0_23 = arith.constant 0 : index
    %20 = vector.load %arg4[%c2_21, %c0_22, %c0_23] : memref<4x8x12xf32, #tpu.memory_space<vmem>>, vector<1x8x12xf32>
    %21 = vector.shape_cast %20 : vector<1x8x12xf32> to vector<8x12xf32>
    %22 = vector.shape_cast %19 : vector<8x12xf32> to vector<1x8x12xf32>
    tpu.vector_store %arg4[%c2_21, %c0_22, %c0_23], %22 {strides = array<i32>} : memref<4x8x12xf32, #tpu.memory_space<vmem>>, vector<1x8x12xf32>,
    %c3 = arith.constant 3 : index
    %c0_24 = arith.constant 0 : index
    %c0_25 = arith.constant 0 : index
    %23 = vector.load %arg3[%c3, %c0_24, %c0_25] : memref<4x16x16xf32, #tpu.memory_space<vmem>>, vector<1x16x16xf32>
    %24 = vector.shape_cast %23 : vector<1x16x16xf32> to vector<16x16xf32>
    %cst_26 = arith.constant dense<0.000000e+00> : vector<8x16xf32>
    %25 = tpu.matmul %0, %24, %cst_26 {dimension_numbers = #tpu.dot_dimension_numbers<[1], [0], [0], [1], [0, 0, 1, 1], [], []>} : vector<8x16xf32>, vector<16x16xf32>, vector<8x16xf32> -> vector<8x16xf32>
    %cst_27 = arith.constant dense<0.000000e+00> : vector<8x12xf32>
    %26 = tpu.matmul %25, %1, %cst_27 {dimension_numbers = #tpu.dot_dimension_numbers<[1], [0], [0], [1], [0, 0, 1, 1], [], []>} : vector<8x16xf32>, vector<16x12xf32>, vector<8x12xf32> -> vector<8x12xf32>
    %c3_28 = arith.constant 3 : index
    %c0_29 = arith.constant 0 : index
    %c0_30 = arith.constant 0 : index
    %27 = vector.load %arg4[%c3_28, %c0_29, %c0_30] : memref<4x8x12xf32, #tpu.memory_space<vmem>>, vector<1x8x12xf32>
    %28 = vector.shape_cast %27 : vector<1x8x12xf32> to vector<8x12xf32>
    %29 = vector.shape_cast %26 : vector<8x12xf32> to vector<1x8x12xf32>
    tpu.vector_store %arg4[%c3_28, %c0_29, %c0_30], %29 {strides = array<i32>} : memref<4x8x12xf32, #tpu.memory_space<vmem>>, vector<1x8x12xf32>,
    return
  }
  func.func @transform_0(%arg0: i32) -> (i32, i32) {
    %c0_i32 = arith.constant 0 : i32
    %c0_i32_0 = arith.constant 0 : i32
    %c0_i32_1 = arith.constant 0 : i32
    return %c0_i32, %c0_i32_0 : i32, i32
  }
  func.func @transform_1(%arg0: i32) -> (i32, i32) {
    %c0_i32 = arith.constant 0 : i32
    %c0_i32_0 = arith.constant 0 : i32
    %c0_i32_1 = arith.constant 0 : i32
    return %c0_i32, %c0_i32_0 : i32, i32
  }
  func.func @transform_2(%arg0: i32) -> (i32, i32, i32) {
    %c0_i32 = arith.constant 0 : i32
    %c0_i32_0 = arith.constant 0 : i32
    %c0_i32_1 = arith.constant 0 : i32
    return %arg0, %c0_i32, %c0_i32_0 : i32, i32, i32
  }
  func.func @transform_3(%arg0: i32) -> (i32, i32, i32) {
    %c0_i32 = arith.constant 0 : i32
    %c0_i32_0 = arith.constant 0 : i32
    %c0_i32_1 = arith.constant 0 : i32
    return %arg0, %c0_i32, %c0_i32_0 : i32, i32, i32
  }
}

</mosaic_0001>

<llo_original>
// kernel: a_call__.1
$region0: #{a_call__.1}
  #allocation0 [shape = 'u32[]', space=smem, size = 0x4, offset = 0x4, fixed_abs, tag = 'smem constant byte address 0x4 - core index']
  #allocation1 [shape = 'u32[144,128]{1,0:T(1,128)}', space=vmem, size = 0x12000, scoped, tag = 'internal scratch']
  %s0 = inlined_call_operand.hbm [shape: f32[8,16], index: 0, kind: input, shape index: {}]
  %s1 = inlined_call_operand.hbm [shape: f32[16,12], index: 1, kind: input, shape index: {}]
  %s2 = inlined_call_operand.hbm [shape: f32[8,16,16], index: 2, kind: input, shape index: {}]
  %s3 = inlined_call_operand.hbm [shape: f32[8,8,12], index: 3, kind: output, shape index: {}]
  %s4 = sld [smem:[#allocation0]]
  $region57: #{a_call__.1} parent=0
    _
  %s6 = ssub.s32 1, %s4
  %s7 = scalar_select 0, %s6, %s4
  $region1: #{a_call__.1} parent=0
    #allocation2 [shape = 'u8[4096]{0}', space=vmem, size = 0x1000, scoped, tag = 'input window, operand 0, single buffered']
    #allocation3 [shape = 's32[2]{0}', space=sflag, size = 0x8, scoped, tag = 'scoped memory for a_call__.1']
    #allocation4 [shape = 's32[2]{0}', space=sflag, size = 0x8, scoped, tag = 'scoped memory for a_call__.1']
    #allocation5 [shape = 'u8[8192]{0}', space=vmem, size = 0x2000, scoped, tag = 'input window, operand 1, single buffered']
    #allocation6 [shape = 's32[1]{0}', space=sflag, size = 0x4, scoped, tag = 'scoped memory for a_call__.1']
    #allocation7 [shape = 'u8[65536]{0}', space=vmem, size = 0x10000, scoped, tag = 'input window, operand 2']
    #allocation8 [shape = 'u8[32768]{0}', space=vmem, size = 0x8000, scoped, tag = 'output window, operand 0']
    %8 = vsyncpa [#allocation3], 0
    %9 = vsyncpa [#allocation6], 0
    %10 = vsyncpa [#allocation4], 0
    %s11 = scalar_lea.sflag [#allocation4], 1
    %12 = vsyncpa %s11, 0
    loop: start=0, step=1, limit=4
    $region2: #{a_call__.1} parent=1 // loop_pre_header
      _
    $region3: #{a_call__.1} parent=1 // loop_header
      %s14 = sphi 0, %s18
      %p15 = scmp.ge.s32.totalorder %s14, 4
      %s22 = sphi 0, %s22
      %s24 = sphi 0, %s22
      %s25 = sphi 0, %s24
      %s39 = sphi 0, %s25
      %s43 = sphi 0, %s43
      %s45 = sphi 0, %s43
      %s46 = sphi 0, %s45
      %s60 = sphi 0, %s46
      %s66 = sphi 0, %s68
      %s69 = sphi 0, %s66
      %s70 = sphi 0, %s69
      %s86 = sphi 0, %s70
      %s92 = sphi 0, %s94
      %s95 = sphi 0, %s92
      %s96 = sphi 0, %s95
      %s112 = sphi 0, %s96
    $region4: #{a_call__.1} parent=1 // loop_header_branch
      %17 = sbr.rel (%p15) target = $region8
    $region5: #{a_call__.1} parent=1 // loop_body
      %s19 = ssub.s32 %s14, 1
      %s20 = ssub.s32 %s14, 2
      %s21 = sadd.s32 %s14, 1
      %s23 = sadd.s32 %s22, 1
      %p26 = scmp.eq.s32.totalorder %s14, 1
      %p27 = scmp.ne.s32.totalorder %s22, %s24
      %p28 = scmp.eq.s32.totalorder %s14, 0
      %p29 = por %p27, %p28
      %p30 = scmp.ne.s32.totalorder %s22, %s24
      %p31 = scmp.eq.s32.totalorder %s19, 1
      %p32 = por %p30, %p31
      %p33 = scmp.ne.s32.totalorder %s24, %s25
      %p34 = scmp.eq.s32.totalorder %s19, 0
      %p35 = por %p33, %p34
      %p36 = scmp.ne.s32.totalorder %s24, %s25
      %p37 = scmp.eq.s32.totalorder %s20, 1
      %p38 = por %p36, %p37
      %p40 = scmp.ne.s32.totalorder %s25, %s39
      %p41 = scmp.eq.s32.totalorder %s20, 0
      %p42 = por %p40, %p41
      %s44 = sadd.s32 %s43, 1
      %p47 = scmp.eq.s32.totalorder %s14, 1
      %p48 = scmp.ne.s32.totalorder %s43, %s45
      %p49 = scmp.eq.s32.totalorder %s14, 0
      %p50 = por %p48, %p49
      %p51 = scmp.ne.s32.totalorder %s43, %s45
      %p52 = scmp.eq.s32.totalorder %s19, 1
      %p53 = por %p51, %p52
      %p54 = scmp.ne.s32.totalorder %s45, %s46
      %p55 = scmp.eq.s32.totalorder %s19, 0
      %p56 = por %p54, %p55
      %p57 = scmp.ne.s32.totalorder %s45, %s46
      %p58 = scmp.eq.s32.totalorder %s20, 1
      %p59 = por %p57, %p58
      %p61 = scmp.ne.s32.totalorder %s46, %s60
      %p62 = scmp.eq.s32.totalorder %s20, 0
      %p63 = por %p61, %p62
      %s64 = ssub.s32 %s14, %s21
      %p65 = scmp.eq.s32.totalorder %s64, 0
      %s67 = sadd.s32 %s66, 1
      %s68 = scalar_select %p65, %s66, %s67
      %p71 = pneg %p65
      %p72 = scmp.eq.s32.totalorder %s14, 1
      %p73 = por %p71, %p72
      %p74 = scmp.ne.s32.totalorder %s66, %s69
      %p75 = scmp.eq.s32.totalorder %s14, 0
      %p76 = por %p74, %p75
      %p77 = scmp.ne.s32.totalorder %s66, %s69
      %p78 = scmp.eq.s32.totalorder %s19, 1
      %p79 = por %p77, %p78
      %p80 = scmp.ne.s32.totalorder %s69, %s70
      %p81 = scmp.eq.s32.totalorder %s19, 0
      %p82 = por %p80, %p81
      %p83 = scmp.ne.s32.totalorder %s69, %s70
      %p84 = scmp.eq.s32.totalorder %s20, 1
      %p85 = por %p83, %p84
      %p87 = scmp.ne.s32.totalorder %s70, %s86
      %p88 = scmp.eq.s32.totalorder %s20, 0
      %p89 = por %p87, %p88
      %s90 = ssub.s32 %s14, %s21
      %p91 = scmp.eq.s32.totalorder %s90, 0
      %s93 = sadd.s32 %s92, 1
      %s94 = scalar_select %p91, %s92, %s93
      %p97 = pneg %p91
      %p98 = scmp.eq.s32.totalorder %s14, 1
      %p99 = por %p97, %p98
      %p100 = scmp.ne.s32.totalorder %s92, %s95
      %p101 = scmp.eq.s32.totalorder %s14, 0
      %p102 = por %p100, %p101
      %p103 = scmp.ne.s32.totalorder %s92, %s95
      %p104 = scmp.eq.s32.totalorder %s19, 1
      %p105 = por %p103, %p104
      %p106 = scmp.ne.s32.totalorder %s95, %s96
      %p107 = scmp.eq.s32.totalorder %s19, 0
      %p108 = por %p106, %p107
      %p109 = scmp.ne.s32.totalorder %s95, %s96
      %p110 = scmp.eq.s32.totalorder %s20, 1
      %p111 = por %p109, %p110
      %p113 = scmp.ne.s32.totalorder %s96, %s112
      %p114 = scmp.eq.s32.totalorder %s20, 0
      %p115 = por %p113, %p114
      %p116 = scmp.le.s32.totalorder 1, %s14
      %p117 = scmp.lt.s32.totalorder %s14, 3
      %p118 = pnand %p116, %p117
      %p119 = pneg %p118
      // Predicated region
      $region9: #{a_call__.1} parent=5 // pred_check
        _
      $region10: #{a_call__.1} parent=5 // pred_check_branch
        %121 = sbr.rel (%p118) target = $region12
      $region11: #{a_call__.1} parent=5 // pred_region
        %s122 = ssub.s32 %s14, 1
        // Predicated region
        $region13: #{a_call__.1} parent=11 // pred_check
          %p123 = pneg %p35
        $region14: #{a_call__.1} parent=11 // pred_check_branch
          %125 = sbr.rel (%p123) target = $region16
        $region15: #{a_call__.1} parent=11 // pred_region
          %s127 = ssub.s32 128, 128
          %128 = vsyncadd [#allocation3], %s127
          %s130 = sshll.u32 [#allocation2], 4
          %s131 = int_to_ptr.vmem [resolvable:$true] %s130
          %133 = dma.hbm_to_vmem [thread:$0]  %s0, 128, %s131, [#allocation3]
        $region16: #{a_call__.1} parent=11 // pred_fallthru
          _
        // Predicated region
        $region17: #{a_call__.1} parent=11 // pred_check
          %p134 = pneg %p56
        $region18: #{a_call__.1} parent=11 // pred_check_branch
          %136 = sbr.rel (%p134) target = $region20
        $region19: #{a_call__.1} parent=11 // pred_region
          %s138 = ssub.s32 256, 256
          %139 = vsyncadd [#allocation6], %s138
          %s140 = sshll.u32 [#allocation5], 4
          %s141 = int_to_ptr.vmem [resolvable:$true] %s140
          %146 = dma.hbm_to_vmem [thread:$0]  %s1, 256, %s141, [#allocation6], 128, 128, 8
        $region20: #{a_call__.1} parent=11 // pred_fallthru
          _
      $region12: #{a_call__.1} parent=5 // pred_fallthru
        _
      %p147 = scmp.lt.s32.totalorder %s14, 2
      // Predicated region
      $region21: #{a_call__.1} parent=5 // pred_check
        %p148 = pneg %p147
      $region22: #{a_call__.1} parent=5 // pred_check_branch
        %150 = sbr.rel (%p148) target = $region24
      $region23: #{a_call__.1} parent=5 // pred_region
        // Predicated region
        $region25: #{a_call__.1} parent=23 // pred_check
          %p151 = pneg %p76
        $region26: #{a_call__.1} parent=23 // pred_check_branch
          %153 = sbr.rel (%p151) target = $region28
        $region27: #{a_call__.1} parent=23 // pred_region
          %s154 = sand.u32 %s14, 1
          %s155 = scalar_lea.sflag [#allocation3], %s154
          %s156 = sand.u32 %s66, 1
          %s157 = smul.addr %s156, 64
          %s158 = scalar_lea.vmem [#allocation7], %s157
          %s159 = smul.u32 4, %s14
          %s161 = ssub.s32 1024, 1024
          %162 = vsyncadd %s155, %s161
          %s163 = smul.addr %s159, 2
          %s164 = smul.addr %s163, 128
          %s165 = scalar_lea.hbm %s2, %s164
          %s166 = sshll.u32 %s158, 4
          %s167 = int_to_ptr.vmem [resolvable:$true] %s166
          %172 = dma.hbm_to_vmem [thread:$0]  %s165, 1024, %s167, %s155, 128, 128, 8
        $region28: #{a_call__.1} parent=23 // pred_fallthru
          _
      $region24: #{a_call__.1} parent=5 // pred_fallthru
        _
      %p173 = scmp.le.s32.totalorder 1, %s14
      %p174 = scmp.lt.s32.totalorder %s14, 3
      %p175 = pnand %p173, %p174
      %p176 = pneg %p175
      // Predicated region
      $region29: #{a_call__.1} parent=5 // pred_check
        _
      $region30: #{a_call__.1} parent=5 // pred_check_branch
        %178 = sbr.rel (%p175) target = $region32
      $region31: #{a_call__.1} parent=5 // pred_region
        %s179 = ssub.s32 %s14, 1
        // Predicated region
        $region33: #{a_call__.1} parent=31 // pred_check
          %p180 = pneg %p35
        $region34: #{a_call__.1} parent=31 // pred_check_branch
          %182 = sbr.rel (%p180) target = $region36
        $region35: #{a_call__.1} parent=31 // pred_region
          %183 = dma.done [#allocation3], 128
        $region36: #{a_call__.1} parent=31 // pred_fallthru
          _
        // Predicated region
        $region37: #{a_call__.1} parent=31 // pred_check
          %p184 = pneg %p56
        $region38: #{a_call__.1} parent=31 // pred_check_branch
          %186 = sbr.rel (%p184) target = $region40
        $region39: #{a_call__.1} parent=31 // pred_region
          %187 = dma.done [#allocation6], 256
        $region40: #{a_call__.1} parent=31 // pred_fallthru
          _
        %s188 = sand.u32 %s19, 1
        %s189 = scalar_lea.sflag [#allocation3], %s188
        %s190 = sand.u32 %s69, 1
        %s191 = smul.addr %s190, 64
        %s192 = scalar_lea.vmem [#allocation7], %s191
        // Predicated region
        $region41: #{a_call__.1} parent=31 // pred_check
          %p193 = pneg %p82
        $region42: #{a_call__.1} parent=31 // pred_check_branch
          %195 = sbr.rel (%p193) target = $region44
        $region43: #{a_call__.1} parent=31 // pred_region
          %196 = dma.done %s189, 1024
        $region44: #{a_call__.1} parent=31 // pred_fallthru
          _
        %p197 = pneg %p35
        %p198 = pneg %p32
        %p199 = pneg %p56
        %p200 = pneg %p53
        %s201 = sand.u32 %s19, 1
        %s202 = scalar_lea.sflag [#allocation3], %s201
        %s203 = sand.u32 %s69, 1
        %s204 = smul.addr %s203, 64
        %s205 = scalar_lea.vmem [#allocation7], %s204
        %p206 = pneg %p82
        %p207 = pneg %p79
        %p208 = pneg %p108
        %p209 = pneg %p105
        %s210 = sand.u32 %s95, 1
        %s211 = scalar_lea.sflag [#allocation4], %s210
        %s212 = sand.u32 %s95, 1
        %s213 = smul.addr %s212, 32
        %s214 = scalar_lea.vmem [#allocation8], %s213
        %s215 = smul.u32 4, %s19
        %s216 = smul.u32 4, %s19
        %v217 = vld [vmem:[#allocation2] sm:$0xff]
        %v218 = vld [vmem:[#allocation5] sm:$0xff]
        %v219 = vld [vmem:[#allocation5 + $0x8] sm:$0xff]
        %v220 = vld [vmem:[%s192] sm:$0xff]
        %v221 = vld [vmem:[%s192 + $0x8] sm:$0xff]
        %vm222 = vcmask 130048
        %v224 = vsel %vm222, %v217, 0
        %226 = vmatprep.subr.mxu0 0.0
        %227 = vmatpush1.msra.mxu0 %v220
        %228 = vmatprep.subr.mxu0 0.0
        %229 = vmatpush1.msra.mxu0 %v221
        %230 = vmatprep.subr.mxu0 0.0
        %231 = vmatpush1.msra.mxu0 0.0
        %232 = vmatprep.subr.mxu0 0.0
        %233 = vmatpush1.msra.mxu0 0.0
        %234 = vmatprep.subr.mxu0 0.0
        %235 = vmatpush1.msra.mxu0 0.0
        %236 = vmatprep.subr.mxu0 0.0
        %237 = vmatpush1.msra.mxu0 0.0
        %238 = vmatprep.subr.mxu0 0.0
        %239 = vmatpush1.msra.mxu0 0.0
        %240 = vmatprep.subr.mxu0 0.0
        %241 = vmatpush1.msra.mxu0 0.0
        %242 = vmatprep.subr.mxu0 0.0
        %243 = vmatpush1.msra.mxu0 0.0
        %244 = vmatprep.subr.mxu0 0.0
        %245 = vmatpush1.msra.mxu0 0.0
        %246 = vmatprep.subr.mxu0 0.0
        %247 = vmatpush1.msra.mxu0 0.0
        %248 = vmatprep.subr.mxu0 0.0
        %249 = vmatpush1.msra.mxu0 0.0
        %250 = vmatprep.subr.mxu0 0.0
        %251 = vmatpush1.msra.mxu0 0.0
        %252 = vmatprep.subr.mxu0 0.0
        %253 = vmatpush1.msra.mxu0 0.0
        %254 = vmatprep.subr.mxu0 0.0
        %255 = vmatpush1.msra.mxu0 0.0
        %256 = vmatprep.subr.mxu0 0.0
        %257 = vmatpush1.msra.mxu0 0.0
        %258 = vmatprep.subr.mxu0 0.0
        %259 = vmatpush1.msra.mxu0 0.0
        %260 = vmatprep.subr.mxu0 0.0
        %261 = vmatpush1.msra.mxu0 0.0
        %262 = vmatprep.subr.mxu0 0.0
        %263 = vmatpush1.msra.mxu0 0.0
        %264 = vmatprep.subr.mxu0 0.0
        %265 = vmatpush1.msra.mxu0 0.0
        %266 = vmatprep.subr.mxu0 0.0
        %267 = vmatpush1.msra.mxu0 0.0
        %268 = vmatprep.subr.mxu0 0.0
        %269 = vmatpush1.msra.mxu0 0.0
        %270 = vmatprep.subr.mxu0 0.0
        %271 = vmatpush1.msra.mxu0 0.0
        %272 = vmatprep.subr.mxu0 0.0
        %273 = vmatpush1.msra.mxu0 0.0
        %274 = vmatprep.subr.mxu0 0.0
        %275 = vmatpush1.msra.mxu0 0.0
        %276 = vmatprep.subr.mxu0 0.0
        %277 = vmatpush1.msra.mxu0 0.0
        %278 = vmatprep.subr.mxu0 0.0
        %279 = vmatpush1.msra.mxu0 0.0
        %280 = vmatprep.subr.mxu0 0.0
        %281 = vmatpush1.msra.mxu0 0.0
        %282 = vmatprep.subr.mxu0 0.0
        %283 = vmatpush1.msra.mxu0 0.0
        %284 = vmatprep.subr.mxu0 0.0
        %285 = vmatpush1.msra.mxu0 0.0
        %286 = vmatprep.subr.mxu0 0.0
        %287 = vmatpush1.msra.mxu0 0.0
        %288 = vmatprep.subr.mxu0 0.0
        %289 = vmatpush1.msra.mxu0 0.0
        %290 = vmatprep.mubr.f32.mxu0 0.0
        %291 = vmatmul.mubr.f32.gmra.mrb[0].mxu0 %v224
        %v292 = vpop.f32.mrb[0].mxu0
        %v293 = vadd.f32 0.0, %v292
        %v294 = vpop.f32.mrb[0].mxu0
        %295 = vdwg.mxu0
        %v297 = vsel %vm222, %v293, 0
        %299 = vmatprep.subr.mxu0 0.0
        %300 = vmatpush1.msra.mxu0 %v218
        %301 = vmatprep.subr.mxu0 0.0
        %302 = vmatpush1.msra.mxu0 %v219
        %303 = vmatprep.subr.mxu0 0.0
        %304 = vmatpush1.msra.mxu0 0.0
        %305 = vmatprep.subr.mxu0 0.0
        %306 = vmatpush1.msra.mxu0 0.0
        %307 = vmatprep.subr.mxu0 0.0
        %308 = vmatpush1.msra.mxu0 0.0
        %309 = vmatprep.subr.mxu0 0.0
        %310 = vmatpush1.msra.mxu0 0.0
        %311 = vmatprep.subr.mxu0 0.0
        %312 = vmatpush1.msra.mxu0 0.0
        %313 = vmatprep.subr.mxu0 0.0
        %314 = vmatpush1.msra.mxu0 0.0
        %315 = vmatprep.subr.mxu0 0.0
        %316 = vmatpush1.msra.mxu0 0.0
        %317 = vmatprep.subr.mxu0 0.0
        %318 = vmatpush1.msra.mxu0 0.0
        %319 = vmatprep.subr.mxu0 0.0
        %320 = vmatpush1.msra.mxu0 0.0
        %321 = vmatprep.subr.mxu0 0.0
        %322 = vmatpush1.msra.mxu0 0.0
        %323 = vmatprep.subr.mxu0 0.0
        %324 = vmatpush1.msra.mxu0 0.0
        %325 = vmatprep.subr.mxu0 0.0
        %326 = vmatpush1.msra.mxu0 0.0
        %327 = vmatprep.subr.mxu0 0.0
        %328 = vmatpush1.msra.mxu0 0.0
        %329 = vmatprep.subr.mxu0 0.0
        %330 = vmatpush1.msra.mxu0 0.0
        %331 = vmatprep.subr.mxu0 0.0
        %332 = vmatpush1.msra.mxu0 0.0
        %333 = vmatprep.subr.mxu0 0.0
        %334 = vmatpush1.msra.mxu0 0.0
        %335 = vmatprep.subr.mxu0 0.0
        %336 = vmatpush1.msra.mxu0 0.0
        %337 = vmatprep.subr.mxu0 0.0
        %338 = vmatpush1.msra.mxu0 0.0
        %339 = vmatprep.subr.mxu0 0.0
        %340 = vmatpush1.msra.mxu0 0.0
        %341 = vmatprep.subr.mxu0 0.0
        %342 = vmatpush1.msra.mxu0 0.0
        %343 = vmatprep.subr.mxu0 0.0
        %344 = vmatpush1.msra.mxu0 0.0
        %345 = vmatprep.subr.mxu0 0.0
        %346 = vmatpush1.msra.mxu0 0.0
        %347 = vmatprep.subr.mxu0 0.0
        %348 = vmatpush1.msra.mxu0 0.0
        %349 = vmatprep.subr.mxu0 0.0
        %350 = vmatpush1.msra.mxu0 0.0
        %351 = vmatprep.subr.mxu0 0.0
        %352 = vmatpush1.msra.mxu0 0.0
        %353 = vmatprep.subr.mxu0 0.0
        %354 = vmatpush1.msra.mxu0 0.0
        %355 = vmatprep.subr.mxu0 0.0
        %356 = vmatpush1.msra.mxu0 0.0
        %357 = vmatprep.subr.mxu0 0.0
        %358 = vmatpush1.msra.mxu0 0.0
        %359 = vmatprep.subr.mxu0 0.0
        %360 = vmatpush1.msra.mxu0 0.0
        %361 = vmatprep.subr.mxu0 0.0
        %362 = vmatpush1.msra.mxu0 0.0
        %363 = vmatprep.mubr.f32.mxu0 0.0
        %364 = vmatmul.mubr.f32.gmra.mrb[0].mxu0 %v297
        %v365 = vpop.f32.mrb[0].mxu0
        %v366 = vadd.f32 0.0, %v365
        %v367 = vpop.f32.mrb[0].mxu0
        %368 = vdwg.mxu0
        %vm369 = vcmask 97280
        %370 = vst.msk [vmem:[%s214] sm:$0xff] %vm369, %v366
        %s371 = scalar_lea.vmem %s192, 16 [#allocation7]
        %v372 = vld [vmem:[%s371] sm:$0xff]
        %v373 = vld [vmem:[%s371 + $0x8] sm:$0xff]
        %374 = vmatprep.subr.mxu0 0.0
        %375 = vmatpush1.msra.mxu0 %v372
        %376 = vmatprep.subr.mxu0 0.0
        %377 = vmatpush1.msra.mxu0 %v373
        %378 = vmatprep.subr.mxu0 0.0
        %379 = vmatpush1.msra.mxu0 0.0
        %380 = vmatprep.subr.mxu0 0.0
        %381 = vmatpush1.msra.mxu0 0.0
        %382 = vmatprep.subr.mxu0 0.0
        %383 = vmatpush1.msra.mxu0 0.0
        %384 = vmatprep.subr.mxu0 0.0
        %385 = vmatpush1.msra.mxu0 0.0
        %386 = vmatprep.subr.mxu0 0.0
        %387 = vmatpush1.msra.mxu0 0.0
        %388 = vmatprep.subr.mxu0 0.0
        %389 = vmatpush1.msra.mxu0 0.0
        %390 = vmatprep.subr.mxu0 0.0
        %391 = vmatpush1.msra.mxu0 0.0
        %392 = vmatprep.subr.mxu0 0.0
        %393 = vmatpush1.msra.mxu0 0.0
        %394 = vmatprep.subr.mxu0 0.0
        %395 = vmatpush1.msra.mxu0 0.0
        %396 = vmatprep.subr.mxu0 0.0
        %397 = vmatpush1.msra.mxu0 0.0
        %398 = vmatprep.subr.mxu0 0.0
        %399 = vmatpush1.msra.mxu0 0.0
        %400 = vmatprep.subr.mxu0 0.0
        %401 = vmatpush1.msra.mxu0 0.0
        %402 = vmatprep.subr.mxu0 0.0
        %403 = vmatpush1.msra.mxu0 0.0
        %404 = vmatprep.subr.mxu0 0.0
        %405 = vmatpush1.msra.mxu0 0.0
        %406 = vmatprep.subr.mxu0 0.0
        %407 = vmatpush1.msra.mxu0 0.0
        %408 = vmatprep.subr.mxu0 0.0
        %409 = vmatpush1.msra.mxu0 0.0
        %410 = vmatprep.subr.mxu0 0.0
        %411 = vmatpush1.msra.mxu0 0.0
        %412 = vmatprep.subr.mxu0 0.0
        %413 = vmatpush1.msra.mxu0 0.0
        %414 = vmatprep.subr.mxu0 0.0
        %415 = vmatpush1.msra.mxu0 0.0
        %416 = vmatprep.subr.mxu0 0.0
        %417 = vmatpush1.msra.mxu0 0.0
        %418 = vmatprep.subr.mxu0 0.0
        %419 = vmatpush1.msra.mxu0 0.0
        %420 = vmatprep.subr.mxu0 0.0
        %421 = vmatpush1.msra.mxu0 0.0
        %422 = vmatprep.subr.mxu0 0.0
        %423 = vmatpush1.msra.mxu0 0.0
        %424 = vmatprep.subr.mxu0 0.0
        %425 = vmatpush1.msra.mxu0 0.0
        %426 = vmatprep.subr.mxu0 0.0
        %427 = vmatpush1.msra.mxu0 0.0
        %428 = vmatprep.subr.mxu0 0.0
        %429 = vmatpush1.msra.mxu0 0.0
        %430 = vmatprep.subr.mxu0 0.0
        %431 = vmatpush1.msra.mxu0 0.0
        %432 = vmatprep.subr.mxu0 0.0
        %433 = vmatpush1.msra.mxu0 0.0
        %434 = vmatprep.subr.mxu0 0.0
        %435 = vmatpush1.msra.mxu0 0.0
        %436 = vmatprep.subr.mxu0 0.0
        %437 = vmatpush1.msra.mxu0 0.0
        %438 = vmatprep.mubr.f32.mxu0 0.0
        %439 = vmatmul.mubr.f32.gmra.mrb[0].mxu0 %v224
        %v440 = vpop.f32.mrb[0].mxu0
        %v441 = vadd.f32 0.0, %v440
        %v442 = vpop.f32.mrb[0].mxu0
        %443 = vdwg.mxu0
        %v445 = vsel %vm222, %v441, 0
        %447 = vmatprep.subr.mxu0 0.0
        %448 = vmatpush1.msra.mxu0 %v218
        %449 = vmatprep.subr.mxu0 0.0
        %450 = vmatpush1.msra.mxu0 %v219
        %451 = vmatprep.subr.mxu0 0.0
        %452 = vmatpush1.msra.mxu0 0.0
        %453 = vmatprep.subr.mxu0 0.0
        %454 = vmatpush1.msra.mxu0 0.0
        %455 = vmatprep.subr.mxu0 0.0
        %456 = vmatpush1.msra.mxu0 0.0
        %457 = vmatprep.subr.mxu0 0.0
        %458 = vmatpush1.msra.mxu0 0.0
        %459 = vmatprep.subr.mxu0 0.0
        %460 = vmatpush1.msra.mxu0 0.0
        %461 = vmatprep.subr.mxu0 0.0
        %462 = vmatpush1.msra.mxu0 0.0
        %463 = vmatprep.subr.mxu0 0.0
        %464 = vmatpush1.msra.mxu0 0.0
        %465 = vmatprep.subr.mxu0 0.0
        %466 = vmatpush1.msra.mxu0 0.0
        %467 = vmatprep.subr.mxu0 0.0
        %468 = vmatpush1.msra.mxu0 0.0
        %469 = vmatprep.subr.mxu0 0.0
        %470 = vmatpush1.msra.mxu0 0.0
        %471 = vmatprep.subr.mxu0 0.0
        %472 = vmatpush1.msra.mxu0 0.0
        %473 = vmatprep.subr.mxu0 0.0
        %474 = vmatpush1.msra.mxu0 0.0
        %475 = vmatprep.subr.mxu0 0.0
        %476 = vmatpush1.msra.mxu0 0.0
        %477 = vmatprep.subr.mxu0 0.0
        %478 = vmatpush1.msra.mxu0 0.0
        %479 = vmatprep.subr.mxu0 0.0
        %480 = vmatpush1.msra.mxu0 0.0
        %481 = vmatprep.subr.mxu0 0.0
        %482 = vmatpush1.msra.mxu0 0.0
        %483 = vmatprep.subr.mxu0 0.0
        %484 = vmatpush1.msra.mxu0 0.0
        %485 = vmatprep.subr.mxu0 0.0
        %486 = vmatpush1.msra.mxu0 0.0
        %487 = vmatprep.subr.mxu0 0.0
        %488 = vmatpush1.msra.mxu0 0.0
        %489 = vmatprep.subr.mxu0 0.0
        %490 = vmatpush1.msra.mxu0 0.0
        %491 = vmatprep.subr.mxu0 0.0
        %492 = vmatpush1.msra.mxu0 0.0
        %493 = vmatprep.subr.mxu0 0.0
        %494 = vmatpush1.msra.mxu0 0.0
        %495 = vmatprep.subr.mxu0 0.0
        %496 = vmatpush1.msra.mxu0 0.0
        %497 = vmatprep.subr.mxu0 0.0
        %498 = vmatpush1.msra.mxu0 0.0
        %499 = vmatprep.subr.mxu0 0.0
        %500 = vmatpush1.msra.mxu0 0.0
        %501 = vmatprep.subr.mxu0 0.0
        %502 = vmatpush1.msra.mxu0 0.0
        %503 = vmatprep.subr.mxu0 0.0
        %504 = vmatpush1.msra.mxu0 0.0
        %505 = vmatprep.subr.mxu0 0.0
        %506 = vmatpush1.msra.mxu0 0.0
        %507 = vmatprep.subr.mxu0 0.0
        %508 = vmatpush1.msra.mxu0 0.0
        %509 = vmatprep.subr.mxu0 0.0
        %510 = vmatpush1.msra.mxu0 0.0
        %511 = vmatprep.mubr.f32.mxu0 0.0
        %512 = vmatmul.mubr.f32.gmra.mrb[0].mxu0 %v445
        %v513 = vpop.f32.mrb[0].mxu0
        %v514 = vadd.f32 0.0, %v513
        %v515 = vpop.f32.mrb[0].mxu0
        %516 = vdwg.mxu0
        %s517 = scalar_lea.vmem %s214, 8 [#allocation8]
        %518 = vst.msk [vmem:[%s517] sm:$0xff] %vm369, %v514
        %s519 = scalar_lea.vmem %s192, 32 [#allocation7]
        %v520 = vld [vmem:[%s519] sm:$0xff]
        %v521 = vld [vmem:[%s519 + $0x8] sm:$0xff]
        %522 = vmatprep.subr.mxu0 0.0
        %523 = vmatpush1.msra.mxu0 %v520
        %524 = vmatprep.subr.mxu0 0.0
        %525 = vmatpush1.msra.mxu0 %v521
        %526 = vmatprep.subr.mxu0 0.0
        %527 = vmatpush1.msra.mxu0 0.0
        %528 = vmatprep.subr.mxu0 0.0
        %529 = vmatpush1.msra.mxu0 0.0
        %530 = vmatprep.subr.mxu0 0.0
        %531 = vmatpush1.msra.mxu0 0.0
        %532 = vmatprep.subr.mxu0 0.0
        %533 = vmatpush1.msra.mxu0 0.0
        %534 = vmatprep.subr.mxu0 0.0
        %535 = vmatpush1.msra.mxu0 0.0
        %536 = vmatprep.subr.mxu0 0.0
        %537 = vmatpush1.msra.mxu0 0.0
        %538 = vmatprep.subr.mxu0 0.0
        %539 = vmatpush1.msra.mxu0 0.0
        %540 = vmatprep.subr.mxu0 0.0
        %541 = vmatpush1.msra.mxu0 0.0
        %542 = vmatprep.subr.mxu0 0.0
        %543 = vmatpush1.msra.mxu0 0.0
        %544 = vmatprep.subr.mxu0 0.0
        %545 = vmatpush1.msra.mxu0 0.0
        %546 = vmatprep.subr.mxu0 0.0
        %547 = vmatpush1.msra.mxu0 0.0
        %548 = vmatprep.subr.mxu0 0.0
        %549 = vmatpush1.msra.mxu0 0.0
        %550 = vmatprep.subr.mxu0 0.0
        %551 = vmatpush1.msra.mxu0 0.0
        %552 = vmatprep.subr.mxu0 0.0
        %553 = vmatpush1.msra.mxu0 0.0
        %554 = vmatprep.subr.mxu0 0.0
        %555 = vmatpush1.msra.mxu0 0.0
        %556 = vmatprep.subr.mxu0 0.0
        %557 = vmatpush1.msra.mxu0 0.0
        %558 = vmatprep.subr.mxu0 0.0
        %559 = vmatpush1.msra.mxu0 0.0
        %560 = vmatprep.subr.mxu0 0.0
        %561 = vmatpush1.msra.mxu0 0.0
        %562 = vmatprep.subr.mxu0 0.0
        %563 = vmatpush1.msra.mxu0 0.0
        %564 = vmatprep.subr.mxu0 0.0
        %565 = vmatpush1.msra.mxu0 0.0
        %566 = vmatprep.subr.mxu0 0.0
        %567 = vmatpush1.msra.mxu0 0.0
        %568 = vmatprep.subr.mxu0 0.0
        %569 = vmatpush1.msra.mxu0 0.0
        %570 = vmatprep.subr.mxu0 0.0
        %571 = vmatpush1.msra.mxu0 0.0
        %572 = vmatprep.subr.mxu0 0.0
        %573 = vmatpush1.msra.mxu0 0.0
        %574 = vmatprep.subr.mxu0 0.0
        %575 = vmatpush1.msra.mxu0 0.0
        %576 = vmatprep.subr.mxu0 0.0
        %577 = vmatpush1.msra.mxu0 0.0
        %578 = vmatprep.subr.mxu0 0.0
        %579 = vmatpush1.msra.mxu0 0.0
        %580 = vmatprep.subr.mxu0 0.0
        %581 = vmatpush1.msra.mxu0 0.0
        %582 = vmatprep.subr.mxu0 0.0
        %583 = vmatpush1.msra.mxu0 0.0
        %584 = vmatprep.subr.mxu0 0.0
        %585 = vmatpush1.msra.mxu0 0.0
        %586 = vmatprep.mubr.f32.mxu0 0.0
        %587 = vmatmul.mubr.f32.gmra.mrb[0].mxu0 %v224
        %v588 = vpop.f32.mrb[0].mxu0
        %v589 = vadd.f32 0.0, %v588
        %v590 = vpop.f32.mrb[0].mxu0
        %591 = vdwg.mxu0
        %v593 = vsel %vm222, %v589, 0
        %595 = vmatprep.subr.mxu0 0.0
        %596 = vmatpush1.msra.mxu0 %v218
        %597 = vmatprep.subr.mxu0 0.0
        %598 = vmatpush1.msra.mxu0 %v219
        %599 = vmatprep.subr.mxu0 0.0
        %600 = vmatpush1.msra.mxu0 0.0
        %601 = vmatprep.subr.mxu0 0.0
        %602 = vmatpush1.msra.mxu0 0.0
        %603 = vmatprep.subr.mxu0 0.0
        %604 = vmatpush1.msra.mxu0 0.0
        %605 = vmatprep.subr.mxu0 0.0
        %606 = vmatpush1.msra.mxu0 0.0
        %607 = vmatprep.subr.mxu0 0.0
        %608 = vmatpush1.msra.mxu0 0.0
        %609 = vmatprep.subr.mxu0 0.0
        %610 = vmatpush1.msra.mxu0 0.0
        %611 = vmatprep.subr.mxu0 0.0
        %612 = vmatpush1.msra.mxu0 0.0
        %613 = vmatprep.subr.mxu0 0.0
        %614 = vmatpush1.msra.mxu0 0.0
        %615 = vmatprep.subr.mxu0 0.0
        %616 = vmatpush1.msra.mxu0 0.0
        %617 = vmatprep.subr.mxu0 0.0
        %618 = vmatpush1.msra.mxu0 0.0
        %619 = vmatprep.subr.mxu0 0.0
        %620 = vmatpush1.msra.mxu0 0.0
        %621 = vmatprep.subr.mxu0 0.0
        %622 = vmatpush1.msra.mxu0 0.0
        %623 = vmatprep.subr.mxu0 0.0
        %624 = vmatpush1.msra.mxu0 0.0
        %625 = vmatprep.subr.mxu0 0.0
        %626 = vmatpush1.msra.mxu0 0.0
        %627 = vmatprep.subr.mxu0 0.0
        %628 = vmatpush1.msra.mxu0 0.0
        %629 = vmatprep.subr.mxu0 0.0
        %630 = vmatpush1.msra.mxu0 0.0
        %631 = vmatprep.subr.mxu0 0.0
        %632 = vmatpush1.msra.mxu0 0.0
        %633 = vmatprep.subr.mxu0 0.0
        %634 = vmatpush1.msra.mxu0 0.0
        %635 = vmatprep.subr.mxu0 0.0
        %636 = vmatpush1.msra.mxu0 0.0
        %637 = vmatprep.subr.mxu0 0.0
        %638 = vmatpush1.msra.mxu0 0.0
        %639 = vmatprep.subr.mxu0 0.0
        %640 = vmatpush1.msra.mxu0 0.0
        %641 = vmatprep.subr.mxu0 0.0
        %642 = vmatpush1.msra.mxu0 0.0
        %643 = vmatprep.subr.mxu0 0.0
        %644 = vmatpush1.msra.mxu0 0.0
        %645 = vmatprep.subr.mxu0 0.0
        %646 = vmatpush1.msra.mxu0 0.0
        %647 = vmatprep.subr.mxu0 0.0
        %648 = vmatpush1.msra.mxu0 0.0
        %649 = vmatprep.subr.mxu0 0.0
        %650 = vmatpush1.msra.mxu0 0.0
        %651 = vmatprep.subr.mxu0 0.0
        %652 = vmatpush1.msra.mxu0 0.0
        %653 = vmatprep.subr.mxu0 0.0
        %654 = vmatpush1.msra.mxu0 0.0
        %655 = vmatprep.subr.mxu0 0.0
        %656 = vmatpush1.msra.mxu0 0.0
        %657 = vmatprep.subr.mxu0 0.0
        %658 = vmatpush1.msra.mxu0 0.0
        %659 = vmatprep.mubr.f32.mxu0 0.0
        %660 = vmatmul.mubr.f32.gmra.mrb[0].mxu0 %v593
        %v661 = vpop.f32.mrb[0].mxu0
        %v662 = vadd.f32 0.0, %v661
        %v663 = vpop.f32.mrb[0].mxu0
        %664 = vdwg.mxu0
        %s665 = scalar_lea.vmem %s214, 16 [#allocation8]
        %666 = vst.msk [vmem:[%s665] sm:$0xff] %vm369, %v662
        %s667 = scalar_lea.vmem %s192, 48 [#allocation7]
        %v668 = vld [vmem:[%s667] sm:$0xff]
        %v669 = vld [vmem:[%s667 + $0x8] sm:$0xff]
        %670 = vmatprep.subr.mxu0 0.0
        %671 = vmatpush1.msra.mxu0 %v668
        %672 = vmatprep.subr.mxu0 0.0
        %673 = vmatpush1.msra.mxu0 %v669
        %674 = vmatprep.subr.mxu0 0.0
        %675 = vmatpush1.msra.mxu0 0.0
        %676 = vmatprep.subr.mxu0 0.0
        %677 = vmatpush1.msra.mxu0 0.0
        %678 = vmatprep.subr.mxu0 0.0
        %679 = vmatpush1.msra.mxu0 0.0
        %680 = vmatprep.subr.mxu0 0.0
        %681 = vmatpush1.msra.mxu0 0.0
        %682 = vmatprep.subr.mxu0 0.0
        %683 = vmatpush1.msra.mxu0 0.0
        %684 = vmatprep.subr.mxu0 0.0
        %685 = vmatpush1.msra.mxu0 0.0
        %686 = vmatprep.subr.mxu0 0.0
        %687 = vmatpush1.msra.mxu0 0.0
        %688 = vmatprep.subr.mxu0 0.0
        %689 = vmatpush1.msra.mxu0 0.0
        %690 = vmatprep.subr.mxu0 0.0
        %691 = vmatpush1.msra.mxu0 0.0
        %692 = vmatprep.subr.mxu0 0.0
        %693 = vmatpush1.msra.mxu0 0.0
        %694 = vmatprep.subr.mxu0 0.0
        %695 = vmatpush1.msra.mxu0 0.0
        %696 = vmatprep.subr.mxu0 0.0
        %697 = vmatpush1.msra.mxu0 0.0
        %698 = vmatprep.subr.mxu0 0.0
        %699 = vmatpush1.msra.mxu0 0.0
        %700 = vmatprep.subr.mxu0 0.0
        %701 = vmatpush1.msra.mxu0 0.0
        %702 = vmatprep.subr.mxu0 0.0
        %703 = vmatpush1.msra.mxu0 0.0
        %704 = vmatprep.subr.mxu0 0.0
        %705 = vmatpush1.msra.mxu0 0.0
        %706 = vmatprep.subr.mxu0 0.0
        %707 = vmatpush1.msra.mxu0 0.0
        %708 = vmatprep.subr.mxu0 0.0
        %709 = vmatpush1.msra.mxu0 0.0
        %710 = vmatprep.subr.mxu0 0.0
        %711 = vmatpush1.msra.mxu0 0.0
        %712 = vmatprep.subr.mxu0 0.0
        %713 = vmatpush1.msra.mxu0 0.0
        %714 = vmatprep.subr.mxu0 0.0
        %715 = vmatpush1.msra.mxu0 0.0
        %716 = vmatprep.subr.mxu0 0.0
        %717 = vmatpush1.msra.mxu0 0.0
        %718 = vmatprep.subr.mxu0 0.0
        %719 = vmatpush1.msra.mxu0 0.0
        %720 = vmatprep.subr.mxu0 0.0
        %721 = vmatpush1.msra.mxu0 0.0
        %722 = vmatprep.subr.mxu0 0.0
        %723 = vmatpush1.msra.mxu0 0.0
        %724 = vmatprep.subr.mxu0 0.0
        %725 = vmatpush1.msra.mxu0 0.0
        %726 = vmatprep.subr.mxu0 0.0
        %727 = vmatpush1.msra.mxu0 0.0
        %728 = vmatprep.subr.mxu0 0.0
        %729 = vmatpush1.msra.mxu0 0.0
        %730 = vmatprep.subr.mxu0 0.0
        %731 = vmatpush1.msra.mxu0 0.0
        %732 = vmatprep.subr.mxu0 0.0
        %733 = vmatpush1.msra.mxu0 0.0
        %734 = vmatprep.mubr.f32.mxu0 0.0
        %735 = vmatmul.mubr.f32.gmra.mrb[0].mxu0 %v224
        %v736 = vpop.f32.mrb[0].mxu0
        %v737 = vadd.f32 0.0, %v736
        %v738 = vpop.f32.mrb[0].mxu0
        %739 = vdwg.mxu0
        %v741 = vsel %vm222, %v737, 0
        %743 = vmatprep.subr.mxu0 0.0
        %744 = vmatpush1.msra.mxu0 %v218
        %745 = vmatprep.subr.mxu0 0.0
        %746 = vmatpush1.msra.mxu0 %v219
        %747 = vmatprep.subr.mxu0 0.0
        %748 = vmatpush1.msra.mxu0 0.0
        %749 = vmatprep.subr.mxu0 0.0
        %750 = vmatpush1.msra.mxu0 0.0
        %751 = vmatprep.subr.mxu0 0.0
        %752 = vmatpush1.msra.mxu0 0.0
        %753 = vmatprep.subr.mxu0 0.0
        %754 = vmatpush1.msra.mxu0 0.0
        %755 = vmatprep.subr.mxu0 0.0
        %756 = vmatpush1.msra.mxu0 0.0
        %757 = vmatprep.subr.mxu0 0.0
        %758 = vmatpush1.msra.mxu0 0.0
        %759 = vmatprep.subr.mxu0 0.0
        %760 = vmatpush1.msra.mxu0 0.0
        %761 = vmatprep.subr.mxu0 0.0
        %762 = vmatpush1.msra.mxu0 0.0
        %763 = vmatprep.subr.mxu0 0.0
        %764 = vmatpush1.msra.mxu0 0.0
        %765 = vmatprep.subr.mxu0 0.0
        %766 = vmatpush1.msra.mxu0 0.0
        %767 = vmatprep.subr.mxu0 0.0
        %768 = vmatpush1.msra.mxu0 0.0
        %769 = vmatprep.subr.mxu0 0.0
        %770 = vmatpush1.msra.mxu0 0.0
        %771 = vmatprep.subr.mxu0 0.0
        %772 = vmatpush1.msra.mxu0 0.0
        %773 = vmatprep.subr.mxu0 0.0
        %774 = vmatpush1.msra.mxu0 0.0
        %775 = vmatprep.subr.mxu0 0.0
        %776 = vmatpush1.msra.mxu0 0.0
        %777 = vmatprep.subr.mxu0 0.0
        %778 = vmatpush1.msra.mxu0 0.0
        %779 = vmatprep.subr.mxu0 0.0
        %780 = vmatpush1.msra.mxu0 0.0
        %781 = vmatprep.subr.mxu0 0.0
        %782 = vmatpush1.msra.mxu0 0.0
        %783 = vmatprep.subr.mxu0 0.0
        %784 = vmatpush1.msra.mxu0 0.0
        %785 = vmatprep.subr.mxu0 0.0
        %786 = vmatpush1.msra.mxu0 0.0
        %787 = vmatprep.subr.mxu0 0.0
        %788 = vmatpush1.msra.mxu0 0.0
        %789 = vmatprep.subr.mxu0 0.0
        %790 = vmatpush1.msra.mxu0 0.0
        %791 = vmatprep.subr.mxu0 0.0
        %792 = vmatpush1.msra.mxu0 0.0
        %793 = vmatprep.subr.mxu0 0.0
        %794 = vmatpush1.msra.mxu0 0.0
        %795 = vmatprep.subr.mxu0 0.0
        %796 = vmatpush1.msra.mxu0 0.0
        %797 = vmatprep.subr.mxu0 0.0
        %798 = vmatpush1.msra.mxu0 0.0
        %799 = vmatprep.subr.mxu0 0.0
        %800 = vmatpush1.msra.mxu0 0.0
        %801 = vmatprep.subr.mxu0 0.0
        %802 = vmatpush1.msra.mxu0 0.0
        %803 = vmatprep.subr.mxu0 0.0
        %804 = vmatpush1.msra.mxu0 0.0
        %805 = vmatprep.subr.mxu0 0.0
        %806 = vmatpush1.msra.mxu0 0.0
        %807 = vmatprep.mubr.f32.mxu0 0.0
        %808 = vmatmul.mubr.f32.gmra.mrb[0].mxu0 %v741
        %v809 = vpop.f32.mrb[0].mxu0
        %v810 = vadd.f32 0.0, %v809
        %v811 = vpop.f32.mrb[0].mxu0
        %812 = vdwg.mxu0
        %s813 = scalar_lea.vmem %s214, 24 [#allocation8]
        %814 = vst.msk [vmem:[%s813] sm:$0xff] %vm369, %v810
        %s815 = sand.u32 %s95, 1
        %s816 = scalar_lea.sflag [#allocation4], %s815
        %s817 = sand.u32 %s95, 1
        %s818 = smul.addr %s817, 32
        %s819 = scalar_lea.vmem [#allocation8], %s818
        // Predicated region
        $region45: #{a_call__.1} parent=31 // pred_check
          %p820 = pneg %p105
        $region46: #{a_call__.1} parent=31 // pred_check_branch
          %822 = sbr.rel (%p820) target = $region48
        $region47: #{a_call__.1} parent=31 // pred_region
          %s823 = smul.u32 4, %s19
          %s825 = ssub.s32 512, 512
          %826 = vsyncadd %s816, %s825
          %s827 = smul.addr %s823, 128
          %s828 = scalar_lea.hbm %s3, %s827
          %s829 = sshll.u32 %s819, 4
          %s830 = int_to_ptr.vmem [resolvable:$true] %s829
          %835 = dma.vmem_to_hbm [thread:$0]  %s830, 512, %s828, %s816, 128, 128, 8
        $region48: #{a_call__.1} parent=31 // pred_fallthru
          _
      $region32: #{a_call__.1} parent=5 // pred_fallthru
        _
      %p836 = scmp.le.s32.totalorder 2, %s14
      // Predicated region
      $region49: #{a_call__.1} parent=5 // pred_check
        %p837 = pneg %p836
      $region50: #{a_call__.1} parent=5 // pred_check_branch
        %839 = sbr.rel (%p837) target = $region52
      $region51: #{a_call__.1} parent=5 // pred_region
        %s840 = ssub.s32 %s14, 2
        // Predicated region
        $region53: #{a_call__.1} parent=51 // pred_check
          %p841 = pneg %p111
        $region54: #{a_call__.1} parent=51 // pred_check_branch
          %843 = sbr.rel (%p841) target = $region56
        $region55: #{a_call__.1} parent=51 // pred_region
          %s844 = sand.u32 %s96, 1
          %s845 = scalar_lea.sflag [#allocation4], %s844
          %s846 = sand.u32 %s96, 1
          %s847 = smul.addr %s846, 32
          %s848 = scalar_lea.vmem [#allocation8], %s847
          %849 = dma.done %s845, 512
        $region56: #{a_call__.1} parent=51 // pred_fallthru
          _
      $region52: #{a_call__.1} parent=5 // pred_fallthru
        _
    $region6: #{a_call__.1} parent=1 // loop_footer
      %s18 = sadd.s32 1, %s14
    $region7: #{a_call__.1} parent=1 // loop_footer_branch
      %13 = sbr.rel target = $region3
    $region8: #{a_call__.1} parent=1 // loop_exit
      _
    %850 = vsyncpa [#allocation3], 1
    %s851 = scalar_lea.sflag [#allocation3], 1
    %852 = vsyncpa %s851, 1
    %853 = vsyncpa [#allocation6], 1
    %854 = vsyncpa [#allocation4], 1
    %s855 = scalar_lea.sflag [#allocation4], 1
    %856 = vsyncpa %s855, 1

</llo_original>
